<compile_context>
chip_gen: v5e
topology: v5e:2x2
jax: 0.10.0
libtpu: 0.0.40
codegen_flags: <defaults>
</compile_context>

<pallas_src>
import jax
import jax.numpy as jnp
from jax import lax
from jax.experimental import pallas as pl
from jax.experimental.pallas import tpu as pltpu


def _critic_kernel(x_ref, w1_ref, b1_ref, w2_ref, b2_ref, w3_ref, b3_ref,
                   w4c_ref, b4_ref, o_ref):
    """x_ref: (TB, S) natural tile; w_i: (out_i, in_i); b_i: (out_i, 1);
    w4c: (h3, 1); o_ref: (1, TB) lane-dense output row."""
    # Layer 1: contract S on the last dim of both operands -> (h1, TB).
    # In-VMEM cast of the x tile to W1's dtype (no-op for f32; bf16 when the
    # caller supplies a bf16 x stream / bf16 W1). f32 accumulation on the MXU.
    xw = x_ref[...].astype(w1_ref.dtype)
    h = jnp.tanh(
        lax.dot_general(w1_ref[...], xw, (((1,), (1,)), ((), ())),
                        preferred_element_type=jnp.float32)
        + b1_ref[...])

    # Layers 2-3: stay in the transposed orientation (features on sublanes,
    # batch on lanes); resident f32 weights, f32 accumulate, f32 bias + tanh.
    h = jnp.tanh(
        jnp.dot(w2_ref[...], h, preferred_element_type=jnp.float32) + b2_ref[...])
    h = jnp.tanh(
        jnp.dot(w3_ref[...], h, preferred_element_type=jnp.float32) + b3_ref[...])

    # Output layer (out_features = 1): VPU broadcast-multiply + sublane (XLU)
    # reduce -> lane-dense (1, TB) row written unmasked.
    o_ref[...] = jnp.sum(h * w4c_ref[...], axis=0, keepdims=True) + b4_ref[...]


def prepare_params(params, use_bf16=False):
    """One-time layout/dtype prep outside the hot path. Input layout matches
    nn.Linear: w_i (out, in), b_i (out,). With use_bf16=True only W1 is stored in
    bf16 (to pair with a bf16 x stream); layers 2-4 are tiny, VMEM-resident and
    stay f32 (no per-element intermediate casts in the kernel)."""
    w1dt = jnp.bfloat16 if use_bf16 else jnp.float32
    return {
        "w1": jnp.asarray(params["w1"], w1dt),                      # (h1, S)
        "b1": jnp.asarray(params["b1"], jnp.float32).reshape(-1, 1),
        "w2": jnp.asarray(params["w2"], jnp.float32),               # (h2, h1)
        "b2": jnp.asarray(params["b2"], jnp.float32).reshape(-1, 1),
        "w3": jnp.asarray(params["w3"], jnp.float32),               # (h3, h2)
        "b3": jnp.asarray(params["b3"], jnp.float32).reshape(-1, 1),
        # (1, h3) -> (h3, 1) column; final layer runs on the VPU/XLU in f32.
        "w4c": jnp.asarray(params["w4"], jnp.float32).reshape(-1, 1),
        "b4": jnp.asarray(params["b4"], jnp.float32).reshape(1, 1),
    }


def _pick_block_b(B, max_block):
    """Batch-tile size: multiple of 128 lanes, large to amortize ~0.35us/step grid
    overhead, capped for VMEM, and split >=2 ways when B allows so both v7x
    TensorCores get work under dimension_semantics=('parallel',)."""
    b128 = ((B + 127) // 128) * 128
    if b128 <= 128:
        return 128
    half = (((b128 // 2) + 127) // 128) * 128
    return max(128, min(max_block, half))


def critic_forward(x, p, *, block_b=None, max_block_b=8192):
    """x: (B, state_space), any float dtype (f32, or bf16 for the bandwidth-saving
    path). p: output of prepare_params. Returns (B, 1) float32."""
    B, S = x.shape
    h1 = p["w1"].shape[0]
    h2 = p["w2"].shape[0]
    h3 = p["w3"].shape[0]

    if block_b is None:
        block_b = _pick_block_b(B, max_block_b)
    n_blocks = pl.cdiv(B, block_b)          # ragged last tile handled by clipping

    resident = lambda i: (0, 0)             # weights/biases resident across batch tiles

    flops = 2 * B * (S * h1 + h1 * h2 + h2 * h3 + h3)
    transcendentals = B * (h1 + h2 + h3)
    param_bytes = sum(int(v.size) * v.dtype.itemsize for v in p.values())
    bytes_accessed = B * S * x.dtype.itemsize + B * 4 + param_bytes

    out = pl.pallas_call(
        _critic_kernel,
        out_shape=jax.ShapeDtypeStruct((1, B), jnp.float32),
        grid=(n_blocks,),
        in_specs=[
            pl.BlockSpec((block_b, S), lambda i: (i, 0)),   # x streamed in natural (B,S) layout
            pl.BlockSpec((h1, S), resident),
            pl.BlockSpec((h1, 1), resident),
            pl.BlockSpec((h2, h1), resident),
            pl.BlockSpec((h2, 1), resident),
            pl.BlockSpec((h3, h2), resident),
            pl.BlockSpec((h3, 1), resident),
            pl.BlockSpec((h3, 1), resident),
            pl.BlockSpec((1, 1), resident),
        ],
        out_specs=pl.BlockSpec((1, block_b), lambda i: (0, i)),
        compiler_params=pltpu.CompilerParams(
            dimension_semantics=("parallel",),          # v7x: shard tiles across 2 TCs
            vmem_limit_bytes=32 * 1024 * 1024),         # big tiles fit on v5e/v6e/v7x
        cost_estimate=pl.CostEstimate(
            flops=flops, transcendentals=transcendentals,
            bytes_accessed=bytes_accessed),
    )(x, p["w1"], p["b1"], p["w2"], p["b2"], p["w3"], p["b3"], p["w4c"], p["b4"])

    return out.reshape(B, 1)


def init_params(key, state_space, hidden):
    """Deterministic synthetic init; shapes match nn.Linear (weight=(out,in), bias=(out,))."""
    dims = [state_space, hidden[0], hidden[1], hidden[2], 1]
    params = {}
    for i in range(4):
        key, kw, kb = jax.random.split(key, 3)
        bound = 1.0 / (dims[i] ** 0.5)  # PyTorch default uniform init bound
        params[f"w{i+1}"] = jax.random.uniform(
            kw, (dims[i + 1], dims[i]), jnp.float32, -bound, bound)
        params[f"b{i+1}"] = jax.random.uniform(
            kb, (dims[i + 1],), jnp.float32, -bound, bound)
    return params


def critic_reference(x, params):
    """Plain-JAX reference for correctness checks."""
    h = jnp.tanh(x @ params["w1"].T + params["b1"])
    h = jnp.tanh(h @ params["w2"].T + params["b2"])
    h = jnp.tanh(h @ params["w3"].T + params["b3"])
    return h @ params["w4"].T + params["b4"]


if __name__ == "__main__":
    key = jax.random.PRNGKey(0)
    state_space = 16
    hidden = [32, 32, 32]

    kp, kx = jax.random.split(key)
    params = init_params(kp, state_space, hidden)
    p32 = prepare_params(params, use_bf16=False)

    fwd = jax.jit(critic_forward, static_argnames=("block_b", "max_block_b"))

    # 1) f32 path, single (clipped) batch tile, tight tolerance.
    batch = 8
    x = jax.random.normal(kx, (batch, state_space), jnp.float32)
    ref = critic_reference(x, params)
    out = jax.block_until_ready(fwd(x, p32))
    assert out.shape == (batch, 1), out.shape
    assert jnp.allclose(out, ref, atol=1e-5, rtol=1e-5), (out, ref)

    # 2) f32 path, auto block_b (2 tiles of 256 for B=300) with a ragged last tile.
    batch2 = 300
    x2 = jax.random.normal(jax.random.PRNGKey(1), (batch2, state_space), jnp.float32)
    ref2 = critic_reference(x2, params)
    out2 = jax.block_until_ready(fwd(x2, p32))
    assert out2.shape == (batch2, 1), out2.shape
    assert jnp.allclose(out2, ref2, atol=1e-5, rtol=1e-5), (out2, ref2)

    # 2b) same input, explicit small block_b -> 3-step grid (exercises index maps).
    out2b = jax.block_until_ready(fwd(x2, p32, block_b=128))
    assert jnp.allclose(out2b, ref2, atol=1e-5, rtol=1e-5), (out2b, ref2)

    # 3) bf16 x-stream path (v6e/v7x HBM-bandwidth option): bf16 x + bf16 W1,
    #    f32 accumulate, layers 2-4 fully f32.
    pbf = prepare_params(params, use_bf16=True)
    x_bf = x.astype(jnp.bfloat16)           # simulates x stored in bf16 upstream
    out_bf = jax.block_until_ready(fwd(x_bf, pbf))
    assert out_bf.shape == (batch, 1), out_bf.shape
    assert jnp.allclose(out_bf, ref, atol=5e-2, rtol=5e-2), (out_bf, ref)

    print("KERNEL_OK")
</pallas_src>

<mosaic_0001>
module attributes {stable_mosaic.version = 11 : i64} {
  func.func @_critic_kernel(%arg0: i32, %arg1: memref<128x16xf32, #tpu.memory_space<vmem>>, %arg2: memref<32x16xf32, #tpu.memory_space<vmem>>, %arg3: memref<32x1xf32, #tpu.memory_space<vmem>>, %arg4: memref<32x32xf32, #tpu.memory_space<vmem>>, %arg5: memref<32x1xf32, #tpu.memory_space<vmem>>, %arg6: memref<32x32xf32, #tpu.memory_space<vmem>>, %arg7: memref<32x1xf32, #tpu.memory_space<vmem>>, %arg8: memref<32x1xf32, #tpu.memory_space<vmem>>, %arg9: memref<1x1xf32, #tpu.memory_space<vmem>>, %arg10: memref<1x128xf32, #tpu.memory_space<vmem>>) attributes {dimension_semantics = [#tpu.dimension_semantics<parallel>], iteration_bounds = array<i64: 1>, scalar_prefetch = 0 : i64, scratch_operands = 0 : i64, tpu.core_type = #tpu.core_type<tc>, window_params = [{transform_indices = @transform_0, window_bounds = array<i64: 128, 16>}, {pipeline_mode = #tpu.pipeline_mode<synchronous>, transform_indices = @transform_1, window_bounds = array<i64: 32, 16>}, {pipeline_mode = #tpu.pipeline_mode<synchronous>, transform_indices = @transform_2, window_bounds = array<i64: 32, 1>}, {pipeline_mode = #tpu.pipeline_mode<synchronous>, transform_indices = @transform_3, window_bounds = array<i64: 32, 32>}, {pipeline_mode = #tpu.pipeline_mode<synchronous>, transform_indices = @transform_4, window_bounds = array<i64: 32, 1>}, {pipeline_mode = #tpu.pipeline_mode<synchronous>, transform_indices = @transform_5, window_bounds = array<i64: 32, 32>}, {pipeline_mode = #tpu.pipeline_mode<synchronous>, transform_indices = @transform_6, window_bounds = array<i64: 32, 1>}, {pipeline_mode = #tpu.pipeline_mode<synchronous>, transform_indices = @transform_7, window_bounds = array<i64: 32, 1>}, {pipeline_mode = #tpu.pipeline_mode<synchronous>, transform_indices = @transform_8, window_bounds = array<i64: 1, 1>}, {transform_indices = @transform_9, window_bounds = array<i64: 1, 128>}]} {
    %c0 = arith.constant 0 : index
    %c0_0 = arith.constant 0 : index
    %0 = vector.load %arg1[%c0, %c0_0] : memref<128x16xf32, #tpu.memory_space<vmem>>, vector<128x16xf32>
    %c0_1 = arith.constant 0 : index
    %c0_2 = arith.constant 0 : index
    %1 = vector.load %arg2[%c0_1, %c0_2] : memref<32x16xf32, #tpu.memory_space<vmem>>, vector<32x16xf32>
    %cst = arith.constant dense<0.000000e+00> : vector<32x128xf32>
    %2 = tpu.matmul %1, %0, %cst {dimension_numbers = #tpu.dot_dimension_numbers<[1], [1], [0], [0], [0, 0, 1, 0], [], []>} : vector<32x16xf32>, vector<128x16xf32>, vector<32x128xf32> -> vector<32x128xf32>
    %c0_3 = arith.constant 0 : index
    %c0_4 = arith.constant 0 : index
    %3 = vector.load %arg3[%c0_3, %c0_4] : memref<32x1xf32, #tpu.memory_space<vmem>>, vector<32x1xf32>
    %4 = vector.broadcast %3 : vector<32x1xf32> to vector<32x128xf32>
    %5 = arith.addf %2, %4 : vector<32x128xf32>
    %6 = math.tanh %5 : vector<32x128xf32>
    %c0_5 = arith.constant 0 : index
    %c0_6 = arith.constant 0 : index
    %7 = vector.load %arg4[%c0_5, %c0_6] : memref<32x32xf32, #tpu.memory_space<vmem>>, vector<32x32xf32>
    %cst_7 = arith.constant dense<0.000000e+00> : vector<32x128xf32>
    %8 = tpu.matmul %7, %6, %cst_7 {dimension_numbers = #tpu.dot_dimension_numbers<[1], [0], [0], [1], [0, 0, 1, 1], [], []>} : vector<32x32xf32>, vector<32x128xf32>, vector<32x128xf32> -> vector<32x128xf32>
    %c0_8 = arith.constant 0 : index
    %c0_9 = arith.constant 0 : index
    %9 = vector.load %arg5[%c0_8, %c0_9] : memref<32x1xf32, #tpu.memory_space<vmem>>, vector<32x1xf32>
    %10 = vector.broadcast %9 : vector<32x1xf32> to vector<32x128xf32>
    %11 = arith.addf %8, %10 : vector<32x128xf32>
    %12 = math.tanh %11 : vector<32x128xf32>
    %c0_10 = arith.constant 0 : index
    %c0_11 = arith.constant 0 : index
    %13 = vector.load %arg6[%c0_10, %c0_11] : memref<32x32xf32, #tpu.memory_space<vmem>>, vector<32x32xf32>
    %cst_12 = arith.constant dense<0.000000e+00> : vector<32x128xf32>
    %14 = tpu.matmul %13, %12, %cst_12 {dimension_numbers = #tpu.dot_dimension_numbers<[1], [0], [0], [1], [0, 0, 1, 1], [], []>} : vector<32x32xf32>, vector<32x128xf32>, vector<32x128xf32> -> vector<32x128xf32>
    %c0_13 = arith.constant 0 : index
    %c0_14 = arith.constant 0 : index
    %15 = vector.load %arg7[%c0_13, %c0_14] : memref<32x1xf32, #tpu.memory_space<vmem>>, vector<32x1xf32>
    %16 = vector.broadcast %15 : vector<32x1xf32> to vector<32x128xf32>
    %17 = arith.addf %14, %16 : vector<32x128xf32>
    %18 = math.tanh %17 : vector<32x128xf32>
    %c0_15 = arith.constant 0 : index
    %c0_16 = arith.constant 0 : index
    %19 = vector.load %arg8[%c0_15, %c0_16] : memref<32x1xf32, #tpu.memory_space<vmem>>, vector<32x1xf32>
    %20 = vector.broadcast %19 : vector<32x1xf32> to vector<32x128xf32>
    %21 = arith.mulf %18, %20 : vector<32x128xf32>
    %cst_17 = arith.constant dense<0.000000e+00> : vector<128xf32>
    %22 = vector.multi_reduction <add>, %21, %cst_17 [0] : vector<32x128xf32> to vector<128xf32>
    %23 = vector.shape_cast %22 : vector<128xf32> to vector<1x128xf32>
    %c0_18 = arith.constant 0 : index
    %c0_19 = arith.constant 0 : index
    %24 = vector.load %arg9[%c0_18, %c0_19] : memref<1x1xf32, #tpu.memory_space<vmem>>, vector<1x1xf32>
    %25 = vector.broadcast %24 : vector<1x1xf32> to vector<1x128xf32>
    %26 = arith.addf %23, %25 : vector<1x128xf32>
    %c0_20 = arith.constant 0 : index
    %c0_21 = arith.constant 0 : index
    %27 = vector.load %arg10[%c0_20, %c0_21] : memref<1x128xf32, #tpu.memory_space<vmem>>, vector<1x128xf32>
    tpu.vector_store %arg10[%c0_20, %c0_21], %26 {strides = array<i32>} : memref<1x128xf32, #tpu.memory_space<vmem>>, vector<1x128xf32>,
    return
  }
  func.func @transform_0(%arg0: i32) -> (i32, i32) {
    %c0_i32 = arith.constant 0 : i32
    %c0_i32_0 = arith.constant 0 : i32
    return %arg0, %c0_i32 : i32, i32
  }
  func.func @transform_1(%arg0: i32) -> (i32, i32) {
    %c0_i32 = arith.constant 0 : i32
    %c0_i32_0 = arith.constant 0 : i32
    %c0_i32_1 = arith.constant 0 : i32
    return %c0_i32, %c0_i32_0 : i32, i32
  }
  func.func @transform_2(%arg0: i32) -> (i32, i32) {
    %c0_i32 = arith.constant 0 : i32
    %c0_i32_0 = arith.constant 0 : i32
    %c0_i32_1 = arith.constant 0 : i32
    return %c0_i32, %c0_i32_0 : i32, i32
  }
  func.func @transform_3(%arg0: i32) -> (i32, i32) {
    %c0_i32 = arith.constant 0 : i32
    %c0_i32_0 = arith.constant 0 : i32
    %c0_i32_1 = arith.constant 0 : i32
    return %c0_i32, %c0_i32_0 : i32, i32
  }
  func.func @transform_4(%arg0: i32) -> (i32, i32) {
    %c0_i32 = arith.constant 0 : i32
    %c0_i32_0 = arith.constant 0 : i32
    %c0_i32_1 = arith.constant 0 : i32
    return %c0_i32, %c0_i32_0 : i32, i32
  }
  func.func @transform_5(%arg0: i32) -> (i32, i32) {
    %c0_i32 = arith.constant 0 : i32
    %c0_i32_0 = arith.constant 0 : i32
    %c0_i32_1 = arith.constant 0 : i32
    return %c0_i32, %c0_i32_0 : i32, i32
  }
  func.func @transform_6(%arg0: i32) -> (i32, i32) {
    %c0_i32 = arith.constant 0 : i32
    %c0_i32_0 = arith.constant 0 : i32
    %c0_i32_1 = arith.constant 0 : i32
    return %c0_i32, %c0_i32_0 : i32, i32
  }
  func.func @transform_7(%arg0: i32) -> (i32, i32) {
    %c0_i32 = arith.constant 0 : i32
    %c0_i32_0 = arith.constant 0 : i32
    %c0_i32_1 = arith.constant 0 : i32
    return %c0_i32, %c0_i32_0 : i32, i32
  }
  func.func @transform_8(%arg0: i32) -> (i32, i32) {
    %c0_i32 = arith.constant 0 : i32
    %c0_i32_0 = arith.constant 0 : i32
    %c0_i32_1 = arith.constant 0 : i32
    return %c0_i32, %c0_i32_0 : i32, i32
  }
  func.func @transform_9(%arg0: i32) -> (i32, i32) {
    %c0_i32 = arith.constant 0 : i32
    %c0_i32_0 = arith.constant 0 : i32
    return %c0_i32, %arg0 : i32, i32
  }
}

</mosaic_0001>

<llo_original>
// kernel: critic_forward.1
$region0: #{critic_forward.1}
  #allocation0 [shape = 'u32[]', space=smem, size = 0x4, offset = 0x4, fixed_abs, tag = 'smem constant byte address 0x4 - core index']
  #allocation1 [shape = 'u32[72,128]{1,0:T(1,128)}', space=vmem, size = 0x9000, scoped, tag = 'internal scratch']
  #allocation2 [shape = 'f32[1,1]{1,0:T(1,128)S(1)}', space=vmem, size = 0x200, scoped, tag = 'scoped memory for critic_forward.1']
  %s0 = inlined_call_operand.vmem [shape: f32[8,16], index: 0, kind: input, shape index: {}]
  %s1 = inlined_call_operand.vmem [shape: f32[32,16], index: 1, kind: input, shape index: {}]
  %s2 = inlined_call_operand.vmem [shape: f32[32,1], index: 2, kind: input, shape index: {}]
  %s3 = inlined_call_operand.vmem [shape: f32[32,32], index: 3, kind: input, shape index: {}]
  %s4 = inlined_call_operand.vmem [shape: f32[32,1], index: 4, kind: input, shape index: {}]
  %s5 = inlined_call_operand.vmem [shape: f32[32,32], index: 5, kind: input, shape index: {}]
  %s6 = inlined_call_operand.vmem [shape: f32[32,1], index: 6, kind: input, shape index: {}]
  %s7 = inlined_call_operand.vmem [shape: f32[32,1], index: 7, kind: input, shape index: {}]
  %s8 = inlined_call_operand.<no memory space> [shape: f32[1,1], index: 8, kind: input, shape index: {}]
  %s9 = inlined_call_operand.hbm [shape: f32[1,8], index: 9, kind: output, shape index: {}]
  %s10 = sld [smem:[#allocation0]]
  $region46: #{critic_forward.1} parent=0
    _
  %s12 = ssub.s32 1, %s10
  %s13 = scalar_select 0, %s12, %s10
  %v14 = vstv %s8
  %15 = vst [vmem:[#allocation2] sm:$0x1] %v14
  $region1: #{critic_forward.1} parent=0
    #allocation3 [shape = 'u8[512]{0}', space=vmem, size = 0x400, scoped, tag = 'output window, operand 0, single buffered']
    #allocation4 [shape = 's32[1]{0}', space=sflag, size = 0x4, scoped, tag = 'scoped memory for critic_forward.1']
    %16 = vsyncpa [#allocation4], 0
    // Predicated region
    $region2: #{critic_forward.1} parent=1 // pred_check
      _
    $region3: #{critic_forward.1} parent=1 // pred_check_branch
      %18 = sbr.rel (0) target = $region5
    $region4: #{critic_forward.1} parent=1 // pred_region
      _
    $region5: #{critic_forward.1} parent=1 // pred_fallthru
      _
    // Predicated region
    $region6: #{critic_forward.1} parent=1 // pred_check
      _
    $region7: #{critic_forward.1} parent=1 // pred_check_branch
      %20 = sbr.rel (0) target = $region9
    $region8: #{critic_forward.1} parent=1 // pred_region
      _
    $region9: #{critic_forward.1} parent=1 // pred_fallthru
      _
    // Predicated region
    $region10: #{critic_forward.1} parent=1 // pred_check
      _
    $region11: #{critic_forward.1} parent=1 // pred_check_branch
      %22 = sbr.rel (0) target = $region13
    $region12: #{critic_forward.1} parent=1 // pred_region
      _
    $region13: #{critic_forward.1} parent=1 // pred_fallthru
      _
    // Predicated region
    $region14: #{critic_forward.1} parent=1 // pred_check
      _
    $region15: #{critic_forward.1} parent=1 // pred_check_branch
      %24 = sbr.rel (0) target = $region17
    $region16: #{critic_forward.1} parent=1 // pred_region
      _
    $region17: #{critic_forward.1} parent=1 // pred_fallthru
      _
    // Predicated region
    $region18: #{critic_forward.1} parent=1 // pred_check
      _
    $region19: #{critic_forward.1} parent=1 // pred_check_branch
      %26 = sbr.rel (0) target = $region21
    $region20: #{critic_forward.1} parent=1 // pred_region
      _
    $region21: #{critic_forward.1} parent=1 // pred_fallthru
      _
    // Predicated region
    $region22: #{critic_forward.1} parent=1 // pred_check
      _
    $region23: #{critic_forward.1} parent=1 // pred_check_branch
      %28 = sbr.rel (0) target = $region25
    $region24: #{critic_forward.1} parent=1 // pred_region
      _
    $region25: #{critic_forward.1} parent=1 // pred_fallthru
      _
    // Predicated region
    $region26: #{critic_forward.1} parent=1 // pred_check
      _
    $region27: #{critic_forward.1} parent=1 // pred_check_branch
      %30 = sbr.rel (0) target = $region29
    $region28: #{critic_forward.1} parent=1 // pred_region
      _
    $region29: #{critic_forward.1} parent=1 // pred_fallthru
      _
    // Predicated region
    $region30: #{critic_forward.1} parent=1 // pred_check
      _
    $region31: #{critic_forward.1} parent=1 // pred_check_branch
      %32 = sbr.rel (0) target = $region33
    $region32: #{critic_forward.1} parent=1 // pred_region
      _
    $region33: #{critic_forward.1} parent=1 // pred_fallthru
      _
    // Predicated region
    $region34: #{critic_forward.1} parent=1 // pred_check
      _
    $region35: #{critic_forward.1} parent=1 // pred_check_branch
      %34 = sbr.rel (0) target = $region37
    $region36: #{critic_forward.1} parent=1 // pred_region
      _
    $region37: #{critic_forward.1} parent=1 // pred_fallthru
      _
    %v35 = vld [vmem:[%s0] sm:$0xff]
    %v36 = vld [vmem:[%s0 + $0x8] sm:$0xff]
    %v37 = vld [vmem:[%s0 + $0x10] sm:$0xff]
    %v38 = vld [vmem:[%s0 + $0x18] sm:$0xff]
    %v39 = vld [vmem:[%s0 + $0x20] sm:$0xff]
    %v40 = vld [vmem:[%s0 + $0x28] sm:$0xff]
    %v41 = vld [vmem:[%s0 + $0x30] sm:$0xff]
    %v42 = vld [vmem:[%s0 + $0x38] sm:$0xff]
    %v43 = vld [vmem:[%s0 + $0x40] sm:$0xff]
    %v44 = vld [vmem:[%s0 + $0x48] sm:$0xff]
    %v45 = vld [vmem:[%s0 + $0x50] sm:$0xff]
    %v46 = vld [vmem:[%s0 + $0x58] sm:$0xff]
    %v47 = vld [vmem:[%s0 + $0x60] sm:$0xff]
    %v48 = vld [vmem:[%s0 + $0x68] sm:$0xff]
    %v49 = vld [vmem:[%s0 + $0x70] sm:$0xff]
    %v50 = vld [vmem:[%s0 + $0x78] sm:$0xff]
    %v51 = vld [vmem:[%s1] sm:$0xff]
    %v52 = vld [vmem:[%s1 + $0x8] sm:$0xff]
    %v53 = vld [vmem:[%s1 + $0x10] sm:$0xff]
    %v54 = vld [vmem:[%s1 + $0x18] sm:$0xff]
    %v55 = vld [vmem:[%s2] sm:$0xff]
    %v56 = vld [vmem:[%s2 + $0x8] sm:$0xff]
    %v57 = vld [vmem:[%s2 + $0x10] sm:$0xff]
    %v58 = vld [vmem:[%s2 + $0x18] sm:$0xff]
    %60 = vset.pattern.permute.xlu0 0
    %61 = vperm.xlu0 %60, %v55
    %v62 = vpop.permute.xlu0 %61
    %65 = vset.pattern.permute.xlu0 0
    %66 = vperm.xlu0 %65, %v56
    %v67 = vpop.permute.xlu0 %66
    %70 = vset.pattern.permute.xlu0 0
    %71 = vperm.xlu0 %70, %v57
    %v72 = vpop.permute.xlu0 %71
    %75 = vset.pattern.permute.xlu0 0
    %76 = vperm.xlu0 %75, %v58
    %v77 = vpop.permute.xlu0 %76
    %vm79 = vcmask 130048
    %v81 = vsel %vm79, %v51, 0
    %v84 = vsel %vm79, %v52, 0
    %v87 = vsel %vm79, %v53, 0
    %v90 = vsel %vm79, %v54, 0
    %v93 = vsel %vm79, %v35, 0
    %v96 = vsel %vm79, %v36, 0
    %v99 = vsel %vm79, %v37, 0
    %v102 = vsel %vm79, %v38, 0
    %v105 = vsel %vm79, %v39, 0
    %v108 = vsel %vm79, %v40, 0
    %v111 = vsel %vm79, %v41, 0
    %v114 = vsel %vm79, %v42, 0
    %v117 = vsel %vm79, %v43, 0
    %v120 = vsel %vm79, %v44, 0
    %v123 = vsel %vm79, %v45, 0
    %v126 = vsel %vm79, %v46, 0
    %v129 = vsel %vm79, %v47, 0
    %v132 = vsel %vm79, %v48, 0
    %v135 = vsel %vm79, %v49, 0
    %v138 = vsel %vm79, %v50, 0
    %140 = vmatpush.xpose.msra.mxu0 %v138
    %141 = vmatpush.xpose.msra.mxu0 %v135
    %142 = vmatpush.xpose.msra.mxu0 %v132
    %143 = vmatpush.xpose.msra.mxu0 %v129
    %144 = vmatpush.xpose.msra.mxu0 %v126
    %145 = vmatpush.xpose.msra.mxu0 %v123
    %146 = vmatpush.xpose.msra.mxu0 %v120
    %147 = vmatpush.xpose.msra.mxu0 %v117
    %148 = vmatpush.xpose.msra.mxu0 %v114
    %149 = vmatpush.xpose.msra.mxu0 %v111
    %150 = vmatpush.xpose.msra.mxu0 %v108
    %151 = vmatpush.xpose.msra.mxu0 %v105
    %152 = vmatpush.xpose.msra.mxu0 %v102
    %153 = vmatpush.xpose.msra.mxu0 %v99
    %154 = vmatpush.xpose.msra.mxu0 %v96
    %155 = vmatpush.xpose.msra.mxu0 %v93
    %156 = vmatmul.f32.gmra.mxu0 %v81
    %v157 = vpop.f32.mrf.mxu0
    %v158 = vadd.f32 %v62, %v157
    %159 = vmatmul.f32.gmra.mxu0 %v84
    %v160 = vpop.f32.mrf.mxu0
    %v161 = vadd.f32 %v67, %v160
    %162 = vmatmul.f32.gmra.mxu0 %v87
    %v163 = vpop.f32.mrf.mxu0
    %v164 = vadd.f32 %v72, %v163
    %165 = vmatmul.f32.gmra.mxu0 %v90
    %v166 = vpop.f32.mrf.mxu0
    %v167 = vadd.f32 %v77, %v166
    %168 = vdwg.mxu0
    %v169 = vtanh.pop %v158
    %v170 = vtanh.pop %v161
    %v171 = vtanh.pop %v164
    %v172 = vtanh.pop %v167
    %v173 = vld [vmem:[%s3] sm:$0xff]
    %v174 = vld [vmem:[%s3 + $0x8] sm:$0xff]
    %v175 = vld [vmem:[%s3 + $0x10] sm:$0xff]
    %v176 = vld [vmem:[%s3 + $0x18] sm:$0xff]
    %v177 = vld [vmem:[%s4] sm:$0xff]
    %v178 = vld [vmem:[%s4 + $0x8] sm:$0xff]
    %v179 = vld [vmem:[%s4 + $0x10] sm:$0xff]
    %v180 = vld [vmem:[%s4 + $0x18] sm:$0xff]
    %182 = vset.pattern.permute.xlu0 0
    %183 = vperm.xlu0 %182, %v177
    %v184 = vpop.permute.xlu0 %183
    %187 = vset.pattern.permute.xlu0 0
    %188 = vperm.xlu0 %187, %v178
    %v189 = vpop.permute.xlu0 %188
    %192 = vset.pattern.permute.xlu0 0
    %193 = vperm.xlu0 %192, %v179
    %v194 = vpop.permute.xlu0 %193
    %197 = vset.pattern.permute.xlu0 0
    %198 = vperm.xlu0 %197, %v180
    %v199 = vpop.permute.xlu0 %198
    %vm201 = vcmask 261120
    %v203 = vsel %vm201, %v173, 0
    %v206 = vsel %vm201, %v174, 0
    %v209 = vsel %vm201, %v175, 0
    %v212 = vsel %vm201, %v176, 0
    %214 = vmatpush.msra.mxu0 0.0
    %215 = vmatpush.msra.mxu0 0.0
    %216 = vmatpush.msra.mxu0 0.0
    %217 = vmatpush.msra.mxu0 0.0
    %218 = vmatpush.msra.mxu0 0.0
    %219 = vmatpush.msra.mxu0 0.0
    %220 = vmatpush.msra.mxu0 0.0
    %221 = vmatpush.msra.mxu0 0.0
    %222 = vmatpush.msra.mxu0 0.0
    %223 = vmatpush.msra.mxu0 0.0
    %224 = vmatpush.msra.mxu0 0.0
    %225 = vmatpush.msra.mxu0 0.0
    %226 = vmatpush.msra.mxu0 %v172
    %227 = vmatpush.msra.mxu0 %v171
    %228 = vmatpush.msra.mxu0 %v170
    %229 = vmatpush.msra.mxu0 %v169
    %230 = vmatmul.f32.gmra.mxu0 %v203
    %v231 = vpop.f32.mrf.mxu0
    %v232 = vadd.f32 %v184, %v231
    %233 = vmatmul.f32.gmra.mxu0 %v206
    %v234 = vpop.f32.mrf.mxu0
    %v235 = vadd.f32 %v189, %v234
    %236 = vmatmul.f32.gmra.mxu0 %v209
    %v237 = vpop.f32.mrf.mxu0
    %v238 = vadd.f32 %v194, %v237
    %239 = vmatmul.f32.gmra.mxu0 %v212
    %v240 = vpop.f32.mrf.mxu0
    %v241 = vadd.f32 %v199, %v240
    %242 = vdwg.mxu0
    %v243 = vtanh.pop %v232
    %v244 = vtanh.pop %v235
    %v245 = vtanh.pop %v238
    %v246 = vtanh.pop %v241
    %v247 = vld [vmem:[%s5] sm:$0xff]
    %v248 = vld [vmem:[%s5 + $0x8] sm:$0xff]
    %v249 = vld [vmem:[%s5 + $0x10] sm:$0xff]
    %v250 = vld [vmem:[%s5 + $0x18] sm:$0xff]
    %v251 = vld [vmem:[%s6] sm:$0xff]
    %v252 = vld [vmem:[%s6 + $0x8] sm:$0xff]
    %v253 = vld [vmem:[%s6 + $0x10] sm:$0xff]
    %v254 = vld [vmem:[%s6 + $0x18] sm:$0xff]
    %256 = vset.pattern.permute.xlu0 0
    %257 = vperm.xlu0 %256, %v251
    %v258 = vpop.permute.xlu0 %257
    %261 = vset.pattern.permute.xlu0 0
    %262 = vperm.xlu0 %261, %v252
    %v263 = vpop.permute.xlu0 %262
    %266 = vset.pattern.permute.xlu0 0
    %267 = vperm.xlu0 %266, %v253
    %v268 = vpop.permute.xlu0 %267
    %271 = vset.pattern.permute.xlu0 0
    %272 = vperm.xlu0 %271, %v254
    %v273 = vpop.permute.xlu0 %272
    %v276 = vsel %vm201, %v247, 0
    %v279 = vsel %vm201, %v248, 0
    %v282 = vsel %vm201, %v249, 0
    %v285 = vsel %vm201, %v250, 0
    %287 = vmatpush.msra.mxu0 0.0
    %288 = vmatpush.msra.mxu0 0.0
    %289 = vmatpush.msra.mxu0 0.0
    %290 = vmatpush.msra.mxu0 0.0
    %291 = vmatpush.msra.mxu0 0.0
    %292 = vmatpush.msra.mxu0 0.0
    %293 = vmatpush.msra.mxu0 0.0
    %294 = vmatpush.msra.mxu0 0.0
    %295 = vmatpush.msra.mxu0 0.0
    %296 = vmatpush.msra.mxu0 0.0
    %297 = vmatpush.msra.mxu0 0.0
    %298 = vmatpush.msra.mxu0 0.0
    %299 = vmatpush.msra.mxu0 %v246
    %300 = vmatpush.msra.mxu0 %v245
    %301 = vmatpush.msra.mxu0 %v244
    %302 = vmatpush.msra.mxu0 %v243
    %303 = vmatmul.f32.gmra.mxu0 %v276
    %v304 = vpop.f32.mrf.mxu0
    %v305 = vadd.f32 %v258, %v304
    %306 = vmatmul.f32.gmra.mxu0 %v279
    %v307 = vpop.f32.mrf.mxu0
    %v308 = vadd.f32 %v263, %v307
    %309 = vmatmul.f32.gmra.mxu0 %v282
    %v310 = vpop.f32.mrf.mxu0
    %v311 = vadd.f32 %v268, %v310
    %312 = vmatmul.f32.gmra.mxu0 %v285
    %v313 = vpop.f32.mrf.mxu0
    %v314 = vadd.f32 %v273, %v313
    %315 = vdwg.mxu0
    %v316 = vtanh.pop %v305
    %v317 = vtanh.pop %v308
    %v318 = vtanh.pop %v311
    %v319 = vtanh.pop %v314
    %v320 = vld [vmem:[%s7] sm:$0xff]
    %v321 = vld [vmem:[%s7 + $0x8] sm:$0xff]
    %v322 = vld [vmem:[%s7 + $0x10] sm:$0xff]
    %v323 = vld [vmem:[%s7 + $0x18] sm:$0xff]
    %325 = vset.pattern.permute.xlu0 0
    %326 = vperm.xlu0 %325, %v320
    %v327 = vpop.permute.xlu0 %326
    %330 = vset.pattern.permute.xlu0 0
    %331 = vperm.xlu0 %330, %v321
    %v332 = vpop.permute.xlu0 %331
    %335 = vset.pattern.permute.xlu0 0
    %336 = vperm.xlu0 %335, %v322
    %v337 = vpop.permute.xlu0 %336
    %340 = vset.pattern.permute.xlu0 0
    %341 = vperm.xlu0 %340, %v323
    %v342 = vpop.permute.xlu0 %341
    %v344 = vmul.f32 %v316, %v327
    %v345 = vmul.f32 %v317, %v332
    %v346 = vmul.f32 %v318, %v337
    %v347 = vmul.f32 %v319, %v342
    %v348 = vadd.f32 %v344, %v345
    %v349 = vadd.f32 %v348, %v346
    %v350 = vadd.f32 %v349, %v347
    %v351 = vrot.slane %v350, 4
    %v352 = vadd.f32 %v350, %v351
    %v353 = vrot.slane %v352, 2
    %v354 = vadd.f32 %v352, %v353
    %v355 = vrot.slane %v354, 1
    %v356 = vadd.f32 %v354, %v355
    %v357 = vld [vmem:[#allocation2] sm:$0x1]
    %359 = vset.pattern.permute.xlu0 0
    %360 = vperm.xlu0 %359, %v357
    %v361 = vpop.permute.xlu0 %360
    %v363 = vperm.slane %v361, 0
    %v364 = vadd.f32 %v356, %v363
    %365 = vst [vmem:[#allocation3] sm:$0x1] %v364
    // Predicated region
    $region38: #{critic_forward.1} parent=1 // pred_check
      _
    $region39: #{critic_forward.1} parent=1 // pred_check_branch
      %367 = sbr.rel (0) target = $region41
    $region40: #{critic_forward.1} parent=1 // pred_region
      %369 = vsyncadd [#allocation4], 0
      %s371 = sshll.u32 [#allocation3], 4
      %s372 = int_to_ptr.vmem [resolvable:$true] %s371
      %s373 = sshll.u32 %s9, 4
      %s374 = int_to_ptr.hbm [resolvable:$true] %s373
      %376 = dma.vmem_to_hbm [thread:$0]  %s372, 16, %s374, [#allocation4]
    $region41: #{critic_forward.1} parent=1 // pred_fallthru
      _
    // Predicated region
    $region42: #{critic_forward.1} parent=1 // pred_check
      _
    $region43: #{critic_forward.1} parent=1 // pred_check_branch
      %378 = sbr.rel (0) target = $region45
    $region44: #{critic_forward.1} parent=1 // pred_region
      %380 = dma.done [#allocation4], 16
    $region45: #{critic_forward.1} parent=1 // pred_fallthru
      _
    %381 = vsyncpa [#allocation4], 1

</llo_original>
